<compile_context>
chip_gen: v7x
topology: tpu7x:2x2x1
jax: 0.10.0
libtpu: 0.0.40
codegen_flags: <defaults>
</compile_context>

<pallas_src>
from functools import partial

import jax
import jax.numpy as jnp
from jax.experimental import pallas as pl
from jax.experimental.pallas import tpu as pltpu


_LANE_CANDIDATES = (4096, 2048, 1024, 512, 256, 128)
_BLOCK_BYTES_DEFAULT = 2 * 1024 * 1024   # v5e/v6e: ~85% of HBM roofline already
_BLOCK_BYTES_V7 = 6 * 1024 * 1024        # v7x: bigger blocks amortize per-step overhead
_VMEM_LIMIT_V7 = 48 * 1024 * 1024        # headroom under v7x's 64 MiB physical VMEM


def _is_v7x():
    """True iff the default backend looks like a v7x part (2 TensorCores/chip)."""
    try:
        return "v7" in jax.devices()[0].device_kind.lower()
    except Exception:  # no TPU / unexpected backend -> conservative defaults
        return False


def _apply_activation(y, activation, out_dtype):
    """Static (trace-time) activation selection; matches torch activation_func."""
    if activation == "relu":
        y = jnp.maximum(y, 0)
    elif activation == "leaky_relu":
        y = jnp.where(y >= 0, y, 0.01 * y)
    elif activation == "selu":
        alpha, scale = 1.6732632423543772, 1.0507009873554805
        yf = y.astype(jnp.float32)
        y = scale * jnp.where(yf > 0, yf, alpha * (jnp.exp(yf) - 1.0))
    elif activation == "none":
        pass
    else:
        raise ValueError(f"unsupported activation: {activation}")
    return y.astype(out_dtype)


def _make_residual_kernel(activation):
    """blocks(x) + shortcut(x) = x + x, then the statically chosen activation."""

    def kernel(x_ref, o_ref):
        v = x_ref[...]
        o_ref[...] = _apply_activation(v + v, activation, o_ref.dtype)

    return kernel


def _forward_impl(x, activation, alias_io):
    orig_shape = x.shape
    dtype = x.dtype
    total = x.size
    itemsize = jnp.dtype(dtype).itemsize

    # The PyTorch module is a float module; leaky_relu/selu on integer inputs
    # would silently promote+truncate, so reject instead of diverging.
    if activation in ("leaky_relu", "selu") and not jnp.issubdtype(dtype, jnp.floating):
        raise NotImplementedError(
            f"activation={activation!r} only supported for floating dtypes")

    sub = {4: 8, 2: 16, 1: 32}.get(itemsize, 8)  # dtype-aware sublane packing

    # Widest lane (multiple of 128) that divides the element count AND keeps at
    # least one full sublane of rows (unmasked stores, full vreg occupancy).
    lane = None
    for cand in _LANE_CANDIDATES:
        if total % cand == 0 and total // cand >= sub:
            lane = cand
            break
    if lane is None:  # tiny tensors: accept a sublane-partial slab rather than pad
        for cand in _LANE_CANDIDATES:
            if total % cand == 0:
                lane = cand
                break

    if lane is None:
        # Element count not divisible by 128: plain jnp is already at the 2-pass
        # HBM roofline; a pad+slice Pallas path would add 2 extra full HBM passes.
        # TODO(synk): never hit for typical NCHW conv activation shapes.
        return _apply_activation(x + x, activation, dtype)

    rows = total // lane
    slab = x.reshape(rows, lane)

    is_v7 = _is_v7x()
    block_bytes = _BLOCK_BYTES_V7 if is_v7 else _BLOCK_BYTES_DEFAULT

    # Row tile: multiple of the sublane count; 4 double-buffered blocks stay well
    # under the scoped-VMEM defaults (v5e 16 MiB, v6e 32 MiB, v7x 32/48 MiB).
    tile_rows = max(sub, (block_bytes // (lane * itemsize)) // sub * sub)
    if tile_rows >= rows:
        tile_rows = rows  # small input: whole slab in a single block

    grid = (pl.cdiv(rows, tile_rows),)

    # v7x: split the streaming loop across both TensorCores (per-TC HBM BW).
    if is_v7 and grid[0] >= 2:
        dim_sem = (getattr(pltpu, "CORE_PARALLEL", "parallel"),)
    else:
        dim_sem = ("parallel",)

    cp_kwargs = dict(dimension_semantics=dim_sem)
    if is_v7:
        cp_kwargs["vmem_limit_bytes"] = _VMEM_LIMIT_V7

    out = pl.pallas_call(
        _make_residual_kernel(activation),
        out_shape=jax.ShapeDtypeStruct(slab.shape, dtype),
        grid=grid,
        in_specs=[pl.BlockSpec((tile_rows, lane), lambda i: (i, 0))],
        out_specs=pl.BlockSpec((tile_rows, lane), lambda i: (i, 0)),
        compiler_params=pltpu.CompilerParams(**cp_kwargs),
        cost_estimate=pl.CostEstimate(
            flops=2 * total,
            transcendentals=total if activation == "selu" else 0,
            bytes_accessed=2 * total * itemsize,
        ),
        # Write the output into the input's HBM buffer when the caller donated x.
        input_output_aliases=({0: 0} if alias_io else {}),
    )(slab)

    return out.reshape(orig_shape)


@partial(jax.jit, static_argnames=("activation",))
def _forward(x, *, activation):
    return _forward_impl(x, activation, alias_io=False)


@partial(jax.jit, static_argnames=("activation",), donate_argnums=(0,))
def _forward_inplace(x, *, activation):
    return _forward_impl(x, activation, alias_io=True)


def residual_block_forward(x, in_channels, out_channels, activation="relu",
                           donate=False):
    """Pallas implementation of ResidualBlock.forward.

    `blocks` and `shortcut` are nn.Identity regardless of should_apply_shortcut,
    so forward(x) == activate(x + x) for any (in_channels, out_channels).

    donate=True aliases the output to x's HBM buffer (mirrors PyTorch's in-place
    `x += residual` / ReLU(inplace=True)); the caller must not reuse x afterwards.
    """
    del in_channels, out_channels  # Identity blocks/shortcut -> unused
    fn = _forward_inplace if donate else _forward
    return fn(x, activation=activation)


if __name__ == "__main__":
    k0, k1, k2 = jax.random.split(jax.random.PRNGKey(0), 3)

    # 1) Small NCHW input matching the PyTorch module's convention (f32, relu).
    #    Exercises the sublane-full narrow-lane path (lane=256, rows=8).
    N, C, H, W = 2, 4, 16, 16
    x = jax.random.normal(k0, (N, C, H, W), dtype=jnp.float32)
    y = jax.block_until_ready(
        residual_block_forward(x, in_channels=C, out_channels=C, activation="relu"))
    y_ref = jnp.maximum(2.0 * x, 0.0)
    assert y.shape == x.shape and y.dtype == x.dtype
    assert jnp.allclose(y, y_ref, atol=1e-6), "mismatch vs reference (f32 small)"

    # 2) Larger input: multi-step pipelined grid + ragged last row-block, with a
    #    donated input so the kernel writes back into x's HBM buffer in place.
    xb = jax.random.normal(k1, (25, 8, 64, 64), dtype=jnp.float32)
    yb_ref = jnp.maximum(2.0 * xb, 0.0)          # reference BEFORE donating xb
    yb = jax.block_until_ready(
        residual_block_forward(xb, in_channels=8, out_channels=8,
                               activation="relu", donate=True))
    assert jnp.allclose(yb, yb_ref, atol=1e-6), "mismatch vs reference (f32 big)"

    # 3) bf16 input: exercises the dtype-aware sublane granularity path.
    xh = jax.random.normal(k2, (N, C, H, W), dtype=jnp.bfloat16)
    yh = jax.block_until_ready(
        residual_block_forward(xh, in_channels=C, out_channels=C, activation="relu"))
    yh_ref = jnp.maximum(xh + xh, 0).astype(jnp.bfloat16)
    assert yh.dtype == jnp.bfloat16
    assert jnp.allclose(yh.astype(jnp.float32), yh_ref.astype(jnp.float32)), "mismatch (bf16)"

    print("KERNEL_OK")
</pallas_src>

<mosaic_0001>
module attributes {stable_mosaic.version = 11 : i64} {
  func.func @kernel(%arg0: i32, %arg1: memref<8x256xf32, #tpu.memory_space<vmem>>, %arg2: memref<8x256xf32, #tpu.memory_space<vmem>>) attributes {dimension_semantics = [#tpu.dimension_semantics<parallel>], iteration_bounds = array<i64: 1>, scalar_prefetch = 0 : i64, scratch_operands = 0 : i64, tpu.core_type = #tpu.core_type<tc>, window_params = [{transform_indices = @transform_0, window_bounds = array<i64: 8, 256>}, {transform_indices = @transform_1, window_bounds = array<i64: 8, 256>}]} {
    %c0 = arith.constant 0 : index
    %c0_0 = arith.constant 0 : index
    %0 = vector.load %arg1[%c0, %c0_0] : memref<8x256xf32, #tpu.memory_space<vmem>>, vector<8x256xf32>
    %1 = arith.addf %0, %0 : vector<8x256xf32>
    %cst = arith.constant 0.000000e+00 : f32
    %2 = vector.broadcast %cst : f32 to vector<8x256xf32>
    %3 = arith.maximumf %1, %2 : vector<8x256xf32>
    %c0_1 = arith.constant 0 : index
    %c0_2 = arith.constant 0 : index
    %4 = vector.load %arg2[%c0_1, %c0_2] : memref<8x256xf32, #tpu.memory_space<vmem>>, vector<8x256xf32>
    tpu.vector_store %arg2[%c0_1, %c0_2], %3 {strides = array<i32>} : memref<8x256xf32, #tpu.memory_space<vmem>>, vector<8x256xf32>,
    return
  }
  func.func @transform_0(%arg0: i32) -> (i32, i32) {
    %c0_i32 = arith.constant 0 : i32
    %c0_i32_0 = arith.constant 0 : i32
    return %arg0, %c0_i32 : i32, i32
  }
  func.func @transform_1(%arg0: i32) -> (i32, i32) {
    %c0_i32 = arith.constant 0 : i32
    %c0_i32_0 = arith.constant 0 : i32
    return %arg0, %c0_i32 : i32, i32
  }
}

</mosaic_0001>

<llo_original>
// kernel: _forward.1
$region0: #{_forward.1}
  #allocation0 [shape = 'u32[]', space=smem, size = 0x4, offset = 0x4, fixed_abs, tag = 'smem constant byte address 0x4 - core index']
  #allocation1 [shape = 'u32[144,128]{1,0:T(1,128)}', space=vmem, size = 0x12000, scoped, tag = 'internal scratch']
  %s0 = inlined_call_operand.vmem [shape: f32[8,256], index: 0, kind: input, shape index: {}]
  %s1 = inlined_call_operand.vmem [shape: f32[8,256], index: 1, kind: output, shape index: {}]
  %s2 = sld [smem:[#allocation0]]
  $region14: #{_forward.1} parent=0
    _
  %s4 = ssub.s32 1, %s2
  %s5 = scalar_select 0, %s4, %s2
  // Predicated region
  $region2: #{_forward.1} parent=0 // pred_check
    _
  $region3: #{_forward.1} parent=0 // pred_check_branch
    %7 = sbr.rel (0) target = $region5
  $region4: #{_forward.1} parent=0 // pred_region
    _
  $region5: #{_forward.1} parent=0 // pred_fallthru
    _
  %v8 = vld [vmem:[%s0] sm:$0xff]
  %v9 = vld [vmem:[%s0 + $0x8] sm:$0xff]
  %v10 = vadd.f32 %v8, %v8
  %v11 = vadd.f32 %v9, %v9
  %v12 = vmax.f32 %v10, 0.0
  %v13 = vmax.f32 %v11, 0.0
  %14 = vst [vmem:[%s1] sm:$0xff] %v12
  %15 = vst [vmem:[%s1 + $0x8] sm:$0xff] %v13
  // Predicated region
  $region6: #{_forward.1} parent=0 // pred_check
    _
  $region7: #{_forward.1} parent=0 // pred_check_branch
    %17 = sbr.rel (0) target = $region9
  $region8: #{_forward.1} parent=0 // pred_region
    _
  $region9: #{_forward.1} parent=0 // pred_fallthru
    _
  // Predicated region
  $region10: #{_forward.1} parent=0 // pred_check
    _
  $region11: #{_forward.1} parent=0 // pred_check_branch
    %19 = sbr.rel (0) target = $region13
  $region12: #{_forward.1} parent=0 // pred_region
    _
  $region13: #{_forward.1} parent=0 // pred_fallthru
    _

</llo_original>
